<compile_context>
chip_gen: v5e
topology: v5e:2x2
jax: 0.10.0
libtpu: 0.0.40
codegen_flags: <defaults>
</compile_context>

<pallas_src>
import functools

import jax
import jax.numpy as jnp
from jax import lax
from jax.experimental import pallas as pl
from jax.experimental.pallas import tpu as pltpu

# Large finite negative instead of -inf: exp underflows to exactly 0 in fp32 for
# partially masked rows; fully-masked rows give uniform 1/S (no NaN).
_NEG_BIG = -1e30


def _round_up(x, m):
    return ((x + m - 1) // m) * m


# ----------------------------------------------------------------------------
# Tiled linear kernel:  out = x @ w (+ b)   (fp32 accumulation in VMEM scratch)
# ----------------------------------------------------------------------------
def _linear_kernel(*refs, has_bias):
    if has_bias:
        x_ref, w_ref, b_ref, o_ref, acc_ref = refs
    else:
        x_ref, w_ref, o_ref, acc_ref = refs
    kk = pl.program_id(2)

    @pl.when(kk == 0)
    def _():
        acc_ref[...] = jnp.zeros_like(acc_ref)

    acc_ref[...] += jnp.dot(x_ref[...], w_ref[...],
                            preferred_element_type=jnp.float32)

    @pl.when(kk == pl.num_programs(2) - 1)
    def _():
        r = acc_ref[...]
        if has_bias:
            r = r + b_ref[...]
        o_ref[...] = r.astype(o_ref.dtype)


def pallas_linear(x2d, w_t, bias=None, *, tm=256, tn=256, tk=512):
    """x2d: (M, K); w_t: (K, N) pre-transposed weight; bias: (N,) or None -> (M, N)."""
    M, K = x2d.shape
    N = w_t.shape[1]
    # Tile = full dim when small; otherwise the target, padding the array up to
    # a multiple of it (never a silent whole-dimension tile for big dims).
    tm = M if M <= tm else tm
    tn = N if N <= tn else tn
    tk = K if K <= tk else tk
    Mp, Np, Kp = _round_up(M, tm), _round_up(N, tn), _round_up(K, tk)
    if (Mp, Kp) != (M, K):
        x2d = jnp.pad(x2d, ((0, Mp - M), (0, Kp - K)))
    if (Kp, Np) != (K, N):
        w_t = jnp.pad(w_t, ((0, Kp - K), (0, Np - N)))

    has_bias = bias is not None
    args = [x2d, w_t]
    in_specs = [
        pl.BlockSpec((tm, tk), lambda i, j, k: (i, k)),
        pl.BlockSpec((tk, tn), lambda i, j, k: (k, j)),
    ]
    if has_bias:
        b = bias.reshape(1, N).astype(jnp.float32)
        if Np != N:
            b = jnp.pad(b, ((0, 0), (0, Np - N)))
        args.append(b)
        in_specs.append(pl.BlockSpec((1, tn), lambda i, j, k: (0, j)))

    out = pl.pallas_call(
        functools.partial(_linear_kernel, has_bias=has_bias),
        out_shape=jax.ShapeDtypeStruct((Mp, Np), x2d.dtype),
        grid=(Mp // tm, Np // tn, Kp // tk),
        in_specs=in_specs,
        out_specs=pl.BlockSpec((tm, tn), lambda i, j, k: (i, j)),
        scratch_shapes=[pltpu.VMEM((tm, tn), jnp.float32)],
        compiler_params=pltpu.CompilerParams(
            dimension_semantics=("parallel", "parallel", "arbitrary")),
    )(*args)
    if (Mp, Np) != (M, N):
        out = out[:M, :N]
    return out


# ----------------------------------------------------------------------------
# Attention core kernel.
#   Layouts (no transposes needed on the XLA side):
#     q:    (T, B, H, D)    block (tq, 1, H, D)
#     k, v: (S, B, H, D)    block (S, 1, H, D)   (Buffered(1): changes only with b)
#     ctx:  (T, B, H, D)    block (tq, 1, H, D)
#     w:    (B, T, S)       block (1, tq, S)  fp32, head-average accumulated here
#   Heads are looped one at a time in-kernel -> per-head live set is (tq, S).
# ----------------------------------------------------------------------------
def _attention_kernel(*refs, num_heads, mask_mode, has_kpm, compute_weights):
    refs = list(refs)
    q_ref = refs.pop(0)
    k_ref = refs.pop(0)
    v_ref = refs.pop(0)
    mask_ref = refs.pop(0) if mask_mode != "none" else None
    kpm_ref = refs.pop(0) if has_kpm else None
    o_ref = refs.pop(0)
    w_ref = refs.pop(0) if compute_weights else None

    inv_heads = 1.0 / float(num_heads)

    # Static Python loop over heads: static slices of the VMEM blocks, and the
    # per-iteration fp32 intermediate stays at (tq, S).
    for h in range(num_heads):
        q = q_ref[:, 0, h, :]                      # (tq, D) -- scaling pre-folded
        k = k_ref[:, 0, h, :]                      # (S, D)
        # scores[t, s] = sum_d q[t, d] * k[s, d]   (no explicit k transpose)
        s = lax.dot_general(q, k, (((1,), (1,)), ((), ())),
                            preferred_element_type=jnp.float32)   # (tq, S)
        if mask_mode == "shared":
            s = s + mask_ref[...]                  # (tq, S)
        elif mask_mode == "per_head":
            s = s + mask_ref[0, h]                 # (tq, S)
        if has_kpm:
            s = s + kpm_ref[0]                     # (1, S) broadcast

        s = s - jnp.max(s, axis=-1, keepdims=True)
        p = jnp.exp(s)
        denom = jnp.sum(p, axis=-1, keepdims=True)
        # EUP approximate reciprocal + one Newton-Raphson step (cheap, accurate).
        r = pl.reciprocal(denom, approx=True)
        r = r * (2.0 - denom * r)
        p = p * r                                  # (tq, S)

        if compute_weights:
            contrib = p * inv_heads
            if h == 0:
                w_ref[0] = contrib
            else:
                w_ref[0] += contrib

        ctx = jnp.dot(p.astype(v_ref.dtype), v_ref[:, 0, h, :],
                      preferred_element_type=jnp.float32)          # (tq, D)
        o_ref[:, 0, h, :] = ctx.astype(o_ref.dtype)


def pallas_attention_core(q, k, v, attn_mask, kpm_add, *, tq=128,
                          compute_weights=True):
    """q: (T, B, H, D); k, v: (S, B, H, D)
    attn_mask: None | (T,S) | (1,T,S) | (B*H,T,S) additive
    kpm_add: None | (B, S) additive fp32
    Returns (ctx (T, B, H, D), avg_weights (B, T, S) fp32 or None)."""
    # TODO(synk): for very long S (and need_weights=False) a flash-style online
    # softmax over S chunks would cap VMEM further; the (tq, S) tile is required
    # anyway here because the module returns the full attention-weight matrix.
    T, B, H, D = q.shape
    S = k.shape[0]
    tq = T if T <= tq else tq
    Tp = _round_up(T, tq)
    if Tp != T:
        q = jnp.pad(q, ((0, Tp - T), (0, 0), (0, 0), (0, 0)))

    args = [q, k, v]
    in_specs = [
        pl.BlockSpec((tq, 1, H, D), lambda b, t: (t, b, 0, 0)),
        pl.BlockSpec((S, 1, H, D), lambda b, t: (0, b, 0, 0),
                     pipeline_mode=pl.Buffered(1)),
        pl.BlockSpec((S, 1, H, D), lambda b, t: (0, b, 0, 0),
                     pipeline_mode=pl.Buffered(1)),
    ]

    mask_mode = "none"
    if attn_mask is not None:
        if attn_mask.ndim == 2 or (attn_mask.ndim == 3 and attn_mask.shape[0] == 1):
            m2 = attn_mask.reshape(attn_mask.shape[-2], attn_mask.shape[-1])
            m2 = m2.astype(jnp.float32)
            if Tp != T:
                m2 = jnp.pad(m2, ((0, Tp - T), (0, 0)))
            args.append(m2)
            in_specs.append(pl.BlockSpec((tq, S), lambda b, t: (t, 0)))
            mask_mode = "shared"
        else:
            m4 = attn_mask.reshape(B, H, T, S).astype(jnp.float32)
            if Tp != T:
                m4 = jnp.pad(m4, ((0, 0), (0, 0), (0, Tp - T), (0, 0)))
            args.append(m4)
            in_specs.append(pl.BlockSpec((1, H, tq, S), lambda b, t: (b, 0, t, 0)))
            mask_mode = "per_head"

    has_kpm = kpm_add is not None
    if has_kpm:
        args.append(kpm_add.reshape(B, 1, S).astype(jnp.float32))
        in_specs.append(pl.BlockSpec((1, 1, S), lambda b, t: (b, 0, 0)))

    if compute_weights:
        out_shape = (jax.ShapeDtypeStruct((Tp, B, H, D), q.dtype),
                     jax.ShapeDtypeStruct((B, Tp, S), jnp.float32))
        out_specs = (pl.BlockSpec((tq, 1, H, D), lambda b, t: (t, b, 0, 0)),
                     pl.BlockSpec((1, tq, S), lambda b, t: (b, t, 0)))
    else:
        out_shape = jax.ShapeDtypeStruct((Tp, B, H, D), q.dtype)
        out_specs = pl.BlockSpec((tq, 1, H, D), lambda b, t: (t, b, 0, 0))

    kernel = functools.partial(_attention_kernel, num_heads=H,
                               mask_mode=mask_mode, has_kpm=has_kpm,
                               compute_weights=compute_weights)
    result = pl.pallas_call(
        kernel,
        out_shape=out_shape,
        grid=(B, Tp // tq),
        in_specs=in_specs,
        out_specs=out_specs,
        compiler_params=pltpu.CompilerParams(
            dimension_semantics=("parallel", "parallel"),
            vmem_limit_bytes=64 * 1024 * 1024),
    )(*args)

    if compute_weights:
        ctx, w = result
    else:
        ctx, w = result, None
    if Tp != T:
        ctx = ctx[:T]
        if w is not None:
            w = w[:, :T]
    return ctx, w


# ----------------------------------------------------------------------------
# Module wrapper
# ----------------------------------------------------------------------------
class MyMultiheadAttentionPallas:
    def __init__(self, embed_dim, num_heads, dropout=0.0, bias=True, key=None):
        assert embed_dim % num_heads == 0, "embed_dim must be divisible by num_heads"
        self.embed_dim = embed_dim
        self.num_heads = num_heads
        self.head_dim = embed_dim // num_heads
        self.dropout = dropout  # dropout == 0 -> no-op
        key = jax.random.PRNGKey(0) if key is None else key
        ks = jax.random.split(key, 5)
        limit = (6.0 / (embed_dim + embed_dim)) ** 0.5
        init = lambda kk: jax.random.uniform(
            kk, (embed_dim, embed_dim), jnp.float32, -limit, limit)
        # torch-style (out_features, in_features) weights (kept for the reference)
        self.q_proj_weight = init(ks[0])
        self.k_proj_weight = init(ks[1])
        self.v_proj_weight = init(ks[2])
        self.out_proj_weight = init(ks[3])
        self.out_proj_bias = (
            jax.random.uniform(ks[4], (embed_dim,), jnp.float32, -limit, limit)
            if bias else None)
        # Pre-transposed (in, out) copies for the kernels; 1/sqrt(D) folded into Wq.
        scaling = float(self.head_dim) ** -0.5
        self._wq_t = self.q_proj_weight.T * scaling
        self._wk_t = self.k_proj_weight.T
        self._wv_t = self.v_proj_weight.T
        self._wo_t = self.out_proj_weight.T
        # Fused (E, 3E) projection for the self-attention fast path.
        self._w_qkv_t = jnp.concatenate([self._wq_t, self._wk_t, self._wv_t], axis=1)

    def __call__(self, query, key, value, attn_mask=None, key_padding_mask=None,
                 need_weights=True):
        """
        query: [tgt_len, bsz, embed_dim]; key/value: [src_len, bsz, embed_dim]
        attn_mask: [tgt_len, src_len] or [1|bsz*num_heads, tgt_len, src_len] (additive)
        key_padding_mask: [bsz, src_len] (bool, True = masked out)
        Returns: (attn_output [tgt_len, bsz, embed_dim],
                  attn_weights averaged over heads [bsz, tgt_len, src_len] or None)
        """
        T, B, E = query.shape
        S = key.shape[0]
        H, D = self.num_heads, self.head_dim

        # --- projections (tiled Pallas matmuls); outputs reshaped for free ---
        if query is key and key is value:
            qkv = pallas_linear(query.reshape(T * B, E), self._w_qkv_t, None)
            qkv = qkv.reshape(T, B, 3, H, D)
            q4, k4, v4 = qkv[:, :, 0], qkv[:, :, 1], qkv[:, :, 2]
        else:
            q4 = pallas_linear(query.reshape(T * B, E), self._wq_t, None
                               ).reshape(T, B, H, D)
            k4 = pallas_linear(key.reshape(S * B, E), self._wk_t, None
                               ).reshape(S, B, H, D)
            v4 = pallas_linear(value.reshape(S * B, E), self._wv_t, None
                               ).reshape(S, B, H, D)

        kpm_add = None
        if key_padding_mask is not None:
            kpm_add = jnp.where(key_padding_mask.astype(bool), _NEG_BIG, 0.0
                                ).astype(jnp.float32)

        # --- attention core (QK^T, masks, softmax, PV, head-averaged weights) ---
        ctx, attn_w = pallas_attention_core(q4, k4, v4, attn_mask, kpm_add,
                                            compute_weights=need_weights)
        # TODO(synk): dropout on attention probabilities not implemented (p=0 here).

        # --- merge heads (free reshape, no transpose) + output projection ---
        z = pallas_linear(ctx.reshape(T * B, E), self._wo_t, self.out_proj_bias
                          ).reshape(T, B, E)
        return z, attn_w


# ----------------------------------------------------------------------------
# Pure-JAX reference
# ----------------------------------------------------------------------------
def reference_forward(mod, query, key, value, attn_mask=None, key_padding_mask=None):
    T, B, E = query.shape
    S = key.shape[0]
    H, D = mod.num_heads, mod.head_dim
    scaling = float(D) ** -0.5
    q = (query @ mod.q_proj_weight.T) * scaling
    k = key @ mod.k_proj_weight.T
    v = value @ mod.v_proj_weight.T
    q = q.reshape(T, B * H, D).transpose(1, 0, 2)
    k = k.reshape(S, B * H, D).transpose(1, 0, 2)
    v = v.reshape(S, B * H, D).transpose(1, 0, 2)
    s = jnp.einsum("btd,bsd->bts", q, k)
    if attn_mask is not None:
        am = attn_mask if attn_mask.ndim == 3 else attn_mask[None]
        s = s + am
    if key_padding_mask is not None:
        kpm = key_padding_mask.astype(bool)
        s = (s.reshape(B, H, T, S)
             + jnp.where(kpm, _NEG_BIG, 0.0)[:, None, None, :]).reshape(B * H, T, S)
    p = jax.nn.softmax(s, axis=-1)
    o = jnp.einsum("bts,bsd->btd", p, v).transpose(1, 0, 2).reshape(T, B, E)
    z = o @ mod.out_proj_weight.T
    if mod.out_proj_bias is not None:
        z = z + mod.out_proj_bias
    return z, p.reshape(B, H, T, S).sum(1) / H


if __name__ == "__main__":
    embed_dim, num_heads = 32, 4
    tgt_len, src_len, bsz = 8, 8, 2

    root = jax.random.PRNGKey(0)
    k_q, k_k, k_v, k_params = jax.random.split(root, 4)
    query = jax.random.normal(k_q, (tgt_len, bsz, embed_dim), jnp.float32)
    key = jax.random.normal(k_k, (src_len, bsz, embed_dim), jnp.float32)
    value = jax.random.normal(k_v, (src_len, bsz, embed_dim), jnp.float32)

    # causal additive attn_mask [tgt_len, src_len]
    attn_mask = jnp.where(
        jnp.arange(src_len)[None, :] > jnp.arange(tgt_len)[:, None], -1e9, 0.0
    ).astype(jnp.float32)
    # key_padding_mask [bsz, src_len]: mask the last two keys of batch element 1
    key_padding_mask = jnp.zeros((bsz, src_len), bool).at[1, -2:].set(True)

    mha = MyMultiheadAttentionPallas(embed_dim, num_heads, dropout=0.0, bias=True,
                                     key=k_params)

    # 1) cross-attention: 2-D additive mask + key padding mask + weights output
    out, weights = mha(query, key, value, attn_mask=attn_mask,
                       key_padding_mask=key_padding_mask)
    out = jax.block_until_ready(out)
    weights = jax.block_until_ready(weights)
    ref_out, ref_w = reference_forward(mha, query, key, value,
                                       attn_mask=attn_mask,
                                       key_padding_mask=key_padding_mask)
    assert out.shape == (tgt_len, bsz, embed_dim)
    assert weights.shape == (bsz, tgt_len, src_len)
    assert jnp.allclose(out, ref_out, atol=1e-3, rtol=1e-3)
    assert jnp.allclose(weights, ref_w, atol=1e-3, rtol=1e-3)

    # 2) self-attention fast path: fused QKV projection, no masks, no weights
    out_sa, w_sa = mha(query, query, query, need_weights=False)
    out_sa = jax.block_until_ready(out_sa)
    ref_sa, _ = reference_forward(mha, query, query, query)
    assert w_sa is None
    assert out_sa.shape == (tgt_len, bsz, embed_dim)
    assert jnp.allclose(out_sa, ref_sa, atol=1e-3, rtol=1e-3)

    print("KERNEL_OK")
</pallas_src>

<mosaic_0001>
module attributes {stable_mosaic.version = 11 : i64} {
  func.func @_linear_kernel(%arg0: i32, %arg1: i32, %arg2: i32, %arg3: memref<16x32xf32, #tpu.memory_space<vmem>>, %arg4: memref<32x32xf32, #tpu.memory_space<vmem>>, %arg5: memref<16x32xf32, #tpu.memory_space<vmem>>, %arg6: memref<16x32xf32, #tpu.memory_space<vmem>>) attributes {dimension_semantics = [#tpu.dimension_semantics<parallel>, #tpu.dimension_semantics<parallel>, #tpu.dimension_semantics<arbitrary>], iteration_bounds = array<i64: 1, 1, 1>, scalar_prefetch = 0 : i64, scratch_operands = 1 : i64, tpu.core_type = #tpu.core_type<tc>, window_params = [{transform_indices = @transform_0, window_bounds = array<i64: 16, 32>}, {transform_indices = @transform_1, window_bounds = array<i64: 32, 32>}, {transform_indices = @transform_2, window_bounds = array<i64: 16, 32>}]} {
    %c0_i32 = arith.constant 0 : i32
    %0 = arith.cmpi eq, %arg2, %c0_i32 : i32
    %1 = arith.extui %0 : i1 to i32
    %c0_i32_0 = arith.constant 0 : i32
    %2 = arith.cmpi ne, %1, %c0_i32_0 : i32
    scf.if %2 {
      %cst_10 = arith.constant 0.000000e+00 : f32
      %12 = vector.broadcast %cst_10 : f32 to vector<16x32xf32>
      %c0_11 = arith.constant 0 : index
      %c0_12 = arith.constant 0 : index
      %13 = vector.load %arg6[%c0_11, %c0_12] : memref<16x32xf32, #tpu.memory_space<vmem>>, vector<16x32xf32>
      tpu.vector_store %arg6[%c0_11, %c0_12], %12 {strides = array<i32>} : memref<16x32xf32, #tpu.memory_space<vmem>>, vector<16x32xf32>,
    } else {
    }
    %c0 = arith.constant 0 : index
    %c0_1 = arith.constant 0 : index
    %3 = vector.load %arg6[%c0, %c0_1] : memref<16x32xf32, #tpu.memory_space<vmem>>, vector<16x32xf32>
    %c0_2 = arith.constant 0 : index
    %c0_3 = arith.constant 0 : index
    %4 = vector.load %arg3[%c0_2, %c0_3] : memref<16x32xf32, #tpu.memory_space<vmem>>, vector<16x32xf32>
    %c0_4 = arith.constant 0 : index
    %c0_5 = arith.constant 0 : index
    %5 = vector.load %arg4[%c0_4, %c0_5] : memref<32x32xf32, #tpu.memory_space<vmem>>, vector<32x32xf32>
    %cst = arith.constant dense<0.000000e+00> : vector<16x32xf32>
    %6 = tpu.matmul %4, %5, %cst {dimension_numbers = #tpu.dot_dimension_numbers<[1], [0], [0], [1], [0, 0, 1, 1], [], []>} : vector<16x32xf32>, vector<32x32xf32>, vector<16x32xf32> -> vector<16x32xf32>
    %7 = arith.addf %3, %6 : vector<16x32xf32>
    %c0_6 = arith.constant 0 : index
    %c0_7 = arith.constant 0 : index
    %8 = vector.load %arg6[%c0_6, %c0_7] : memref<16x32xf32, #tpu.memory_space<vmem>>, vector<16x32xf32>
    tpu.vector_store %arg6[%c0_6, %c0_7], %7 {strides = array<i32>} : memref<16x32xf32, #tpu.memory_space<vmem>>, vector<16x32xf32>,
    %c0_i32_8 = arith.constant 0 : i32
    %9 = arith.cmpi eq, %arg2, %c0_i32_8 : i32
    %10 = arith.extui %9 : i1 to i32
    %c0_i32_9 = arith.constant 0 : i32
    %11 = arith.cmpi ne, %10, %c0_i32_9 : i32
    scf.if %11 {
      %c0_10 = arith.constant 0 : index
      %c0_11 = arith.constant 0 : index
      %12 = vector.load %arg6[%c0_10, %c0_11] : memref<16x32xf32, #tpu.memory_space<vmem>>, vector<16x32xf32>
      %c0_12 = arith.constant 0 : index
      %c0_13 = arith.constant 0 : index
      %13 = vector.load %arg5[%c0_12, %c0_13] : memref<16x32xf32, #tpu.memory_space<vmem>>, vector<16x32xf32>
      tpu.vector_store %arg5[%c0_12, %c0_13], %12 {strides = array<i32>} : memref<16x32xf32, #tpu.memory_space<vmem>>, vector<16x32xf32>,
    } else {
    }
    return
  }
  func.func @transform_0(%arg0: i32, %arg1: i32, %arg2: i32) -> (i32, i32) {
    %c0_i32 = arith.constant 0 : i32
    return %arg0, %arg2 : i32, i32
  }
  func.func @transform_1(%arg0: i32, %arg1: i32, %arg2: i32) -> (i32, i32) {
    %c0_i32 = arith.constant 0 : i32
    return %arg2, %arg1 : i32, i32
  }
  func.func @transform_2(%arg0: i32, %arg1: i32, %arg2: i32) -> (i32, i32) {
    %c0_i32 = arith.constant 0 : i32
    return %arg0, %arg1 : i32, i32
  }
}

</mosaic_0001>

<llo_original>
// kernel: tpu_custom_call.1
$region0: #{tpu_custom_call.1}
  #allocation0 [shape = 'u32[]', space=smem, size = 0x4, offset = 0x4, fixed_abs, tag = 'smem constant byte address 0x4 - core index']
  #allocation1 [shape = 'u32[72,128]{1,0:T(1,128)}', space=vmem, size = 0x9000, scoped, tag = 'internal scratch']
  #allocation2 [shape = 'f32[16,32]{1,0:T(8,128)}', space=vmem, size = 0x2000, scoped, tag = 'scratch operand']
  %s0 = inlined_call_operand.hbm [shape: f32[16,32], index: 0, kind: input, shape index: {}]
  %s1 = inlined_call_operand.hbm [shape: f32[32,32], index: 1, kind: input, shape index: {}]
  %s2 = inlined_call_operand.hbm [shape: f32[16,32], index: 2, kind: output, shape index: {}]
  %s3 = sld [smem:[#allocation0]]
  $region34: #{tpu_custom_call.1} parent=0
    _
  %s5 = ssub.s32 1, %s3
  %s6 = scalar_select 0, %s5, %s3
  $region1: #{tpu_custom_call.1} parent=0
    #allocation3 [shape = 'u8[8192]{0}', space=vmem, size = 0x2000, scoped, tag = 'input window, operand 0, single buffered']
    #allocation4 [shape = 's32[1]{0}', space=sflag, size = 0x4, scoped, tag = 'scoped memory for tpu_custom_call.1']
    #allocation5 [shape = 's32[1]{0}', space=sflag, size = 0x4, scoped, tag = 'scoped memory for tpu_custom_call.1']
    #allocation6 [shape = 'u8[16384]{0}', space=vmem, size = 0x4000, scoped, tag = 'input window, operand 1, single buffered']
    #allocation7 [shape = 's32[1]{0}', space=sflag, size = 0x4, scoped, tag = 'scoped memory for tpu_custom_call.1']
    #allocation8 [shape = 'u8[8192]{0}', space=vmem, size = 0x2000, scoped, tag = 'output window, operand 0, single buffered']
    %7 = vsyncpa [#allocation4], 0
    %8 = vsyncpa [#allocation7], 0
    %9 = vsyncpa [#allocation5], 0
    // Predicated region
    $region2: #{tpu_custom_call.1} parent=1 // pred_check
      _
    $region3: #{tpu_custom_call.1} parent=1 // pred_check_branch
      %11 = sbr.rel (0) target = $region5
    $region4: #{tpu_custom_call.1} parent=1 // pred_region
      %13 = vsyncadd [#allocation4], 0
      %s14 = sshll.u32 %s0, 4
      %s15 = int_to_ptr.hbm [resolvable:$true] %s14
      %s16 = sshll.u32 [#allocation3], 4
      %s17 = int_to_ptr.vmem [resolvable:$true] %s16
      %22 = dma.hbm_to_vmem [thread:$0]  %s15, 256, %s17, [#allocation4], 128, 128, 8
    $region5: #{tpu_custom_call.1} parent=1 // pred_fallthru
      _
    // Predicated region
    $region6: #{tpu_custom_call.1} parent=1 // pred_check
      _
    $region7: #{tpu_custom_call.1} parent=1 // pred_check_branch
      %24 = sbr.rel (0) target = $region9
    $region8: #{tpu_custom_call.1} parent=1 // pred_region
      %26 = vsyncadd [#allocation7], 0
      %s27 = sshll.u32 %s1, 4
      %s28 = int_to_ptr.hbm [resolvable:$true] %s27
      %s29 = sshll.u32 [#allocation6], 4
      %s30 = int_to_ptr.vmem [resolvable:$true] %s29
      %35 = dma.hbm_to_vmem [thread:$0]  %s28, 512, %s30, [#allocation7], 128, 128, 8
    $region9: #{tpu_custom_call.1} parent=1 // pred_fallthru
      _
    // Predicated region
    $region10: #{tpu_custom_call.1} parent=1 // pred_check
      _
    $region11: #{tpu_custom_call.1} parent=1 // pred_check_branch
      %37 = sbr.rel (0) target = $region13
    $region12: #{tpu_custom_call.1} parent=1 // pred_region
      %39 = dma.done [#allocation4], 256
    $region13: #{tpu_custom_call.1} parent=1 // pred_fallthru
      _
    // Predicated region
    $region14: #{tpu_custom_call.1} parent=1 // pred_check
      _
    $region15: #{tpu_custom_call.1} parent=1 // pred_check_branch
      %41 = sbr.rel (0) target = $region17
    $region16: #{tpu_custom_call.1} parent=1 // pred_region
      %43 = dma.done [#allocation7], 512
    $region17: #{tpu_custom_call.1} parent=1 // pred_fallthru
      _
    %p44 = scmp.eq.s32.totalorder 0, 0
    // Predicated region
    $region18: #{tpu_custom_call.1} parent=1 // pred_check
      %p45 = pneg %p44
    $region19: #{tpu_custom_call.1} parent=1 // pred_check_branch
      %47 = sbr.rel (%p45) target = $region21
    $region20: #{tpu_custom_call.1} parent=1 // pred_region
      %vm48 = vcmask 261120
      %49 = vst.msk [vmem:[#allocation2] sm:$0xff] %vm48, 0.0
      %50 = vst.msk [vmem:[#allocation2 + $0x8] sm:$0xff] %vm48, 0.0
    $region21: #{tpu_custom_call.1} parent=1 // pred_fallthru
      _
    %v51 = vld [vmem:[#allocation2] sm:$0xff]
    %v52 = vld [vmem:[#allocation2 + $0x8] sm:$0xff]
    %v53 = vld [vmem:[#allocation3] sm:$0xff]
    %v54 = vld [vmem:[#allocation3 + $0x8] sm:$0xff]
    %v55 = vld [vmem:[#allocation6] sm:$0xff]
    %v56 = vld [vmem:[#allocation6 + $0x8] sm:$0xff]
    %v57 = vld [vmem:[#allocation6 + $0x10] sm:$0xff]
    %v58 = vld [vmem:[#allocation6 + $0x18] sm:$0xff]
    %vm59 = vcmask 261120
    %v61 = vsel %vm59, %v53, 0
    %v64 = vsel %vm59, %v54, 0
    %66 = vmatpush.msra.mxu0 0.0
    %67 = vmatpush.msra.mxu0 0.0
    %68 = vmatpush.msra.mxu0 0.0
    %69 = vmatpush.msra.mxu0 0.0
    %70 = vmatpush.msra.mxu0 0.0
    %71 = vmatpush.msra.mxu0 0.0
    %72 = vmatpush.msra.mxu0 0.0
    %73 = vmatpush.msra.mxu0 0.0
    %74 = vmatpush.msra.mxu0 0.0
    %75 = vmatpush.msra.mxu0 0.0
    %76 = vmatpush.msra.mxu0 0.0
    %77 = vmatpush.msra.mxu0 0.0
    %78 = vmatpush.msra.mxu0 %v58
    %79 = vmatpush.msra.mxu0 %v57
    %80 = vmatpush.msra.mxu0 %v56
    %81 = vmatpush.msra.mxu0 %v55
    %82 = vmatmul.f32.gmra.mxu0 %v61
    %v83 = vpop.f32.mrf.mxu0
    %v84 = vadd.f32 0.0, %v83
    %85 = vmatmul.f32.gmra.mxu0 %v64
    %v86 = vpop.f32.mrf.mxu0
    %v87 = vadd.f32 0.0, %v86
    %88 = vdwg.mxu0
    %v89 = vadd.f32 %v51, %v84
    %v90 = vadd.f32 %v52, %v87
    %91 = vst.msk [vmem:[#allocation2] sm:$0xff] %vm59, %v89
    %92 = vst.msk [vmem:[#allocation2 + $0x8] sm:$0xff] %vm59, %v90
    // Predicated region
    $region22: #{tpu_custom_call.1} parent=1 // pred_check
      %p93 = pneg %p44
    $region23: #{tpu_custom_call.1} parent=1 // pred_check_branch
      %95 = sbr.rel (%p93) target = $region25
    $region24: #{tpu_custom_call.1} parent=1 // pred_region
      %v96 = vld [vmem:[#allocation2] sm:$0xff]
      %v97 = vld [vmem:[#allocation2 + $0x8] sm:$0xff]
      %98 = vst.msk [vmem:[#allocation8] sm:$0xff] %vm59, %v96
      %99 = vst.msk [vmem:[#allocation8 + $0x8] sm:$0xff] %vm59, %v97
    $region25: #{tpu_custom_call.1} parent=1 // pred_fallthru
      _
    // Predicated region
    $region26: #{tpu_custom_call.1} parent=1 // pred_check
      _
    $region27: #{tpu_custom_call.1} parent=1 // pred_check_branch
      %101 = sbr.rel (0) target = $region29
    $region28: #{tpu_custom_call.1} parent=1 // pred_region
      %103 = vsyncadd [#allocation5], 0
      %s104 = sshll.u32 [#allocation8], 4
      %s105 = int_to_ptr.vmem [resolvable:$true] %s104
      %s106 = sshll.u32 %s2, 4
      %s107 = int_to_ptr.hbm [resolvable:$true] %s106
      %112 = dma.vmem_to_hbm [thread:$0]  %s105, 256, %s107, [#allocation5], 128, 128, 8
    $region29: #{tpu_custom_call.1} parent=1 // pred_fallthru
      _
    // Predicated region
    $region30: #{tpu_custom_call.1} parent=1 // pred_check
      _
    $region31: #{tpu_custom_call.1} parent=1 // pred_check_branch
      %114 = sbr.rel (0) target = $region33
    $region32: #{tpu_custom_call.1} parent=1 // pred_region
      %116 = dma.done [#allocation5], 256
    $region33: #{tpu_custom_call.1} parent=1 // pred_fallthru
      _
    %117 = vsyncpa [#allocation4], 1
    %118 = vsyncpa [#allocation7], 1
    %119 = vsyncpa [#allocation5], 1

</llo_original>
